<compile_context>
chip_gen: v7x
topology: tpu7x:2x2x1
jax: 0.10.0
libtpu: 0.0.40
codegen_flags: <defaults>
</compile_context>

<pallas_src>
import jax
import jax.numpy as jnp
from jax import lax
from jax.experimental import pallas as pl
from jax.experimental.pallas import tpu as pltpu

IN_DIM = 128
HID_DIM = 64
OUT_DIM = 1

_MAX_TB = 16384                     # sweep ceiling; default stays at 4096
_VMEM_LIMIT = 32 * 1024 * 1024      # safe on v5e/v6e/v7x, covers tb<=16384


def _round_up(n, m):
    return (n + m - 1) // m * m


def _num_tensorcores():
    """Best-effort TensorCore-per-chip count (v7x has 2, v5e/v6e have 1)."""
    try:
        kind = jax.devices()[0].device_kind.lower()
        return 2 if "v7" in kind else 1
    except Exception:  # pragma: no cover - be conservative if query fails
        return 1


def _select_tile(B, tb_request):
    """Pick (tb, grid) for the batch dimension.

    - tb == B (single full block) when the batch fits in one tile: block
      dims equal to the full array dims need no multiple-of-8 rounding and
      no padding at all.
    - otherwise tb is a multiple of 8 (f32 sublane constraint) and the grid
      is pl.cdiv(B, tb); the ragged last block is handled by Pallas.
    - on v7x, large batches are split so grid >= 2 and both TensorCores get
      work via the "parallel" dimension semantics.
    """
    tb = max(8, min(int(tb_request), _MAX_TB))
    if _num_tensorcores() > 1 and B >= 2048:
        tb = min(tb, _round_up(pl.cdiv(B, 2), 8))
    if B <= tb:
        return B, 1
    tb = _round_up(tb, 8)
    return tb, pl.cdiv(B, tb)


def mlp_kernel(x_ref, w1_ref, b1_ref, w2_ref, b2_ref, o_ref):
    # fc1: f32 MXU matmul (128 -> 64), bias + ReLU on the VPU.
    h = jnp.dot(x_ref[...], w1_ref[...], preferred_element_type=jnp.float32)
    h = jnp.maximum(h + b1_ref[...], 0.0)                       # (tb, 64) f32
    # fc2 as a lane-dense (1, tb) row: contract w2_row (1, 64) with h (tb, 64)
    # over the hidden dim -> no 1-lane output column / masked partial stores.
    y = lax.dot_general(w2_ref[...], h,
                        dimension_numbers=(((1,), (1,)), ((), ())),
                        preferred_element_type=jnp.float32)     # (1, tb)
    o_ref[0] = y + b2_ref[0, 0]                                 # scalar bias (SMEM)


def ai_transaction_validator_forward(x, w1_t, b1, w2_row, b2, *, tb=4096):
    """x: (B, 128) f32.  w1_t: (128, 64), b1: (1, 64), w2_row: (1, 64), b2: (1, 1).

    Returns (B, 1) float32 scores.  For single-digit B a plain jnp expression
    beats any kernel dispatch; this kernel pays off once batches reach the
    thousands (tb is sweepable up to 16384 for very large batches).
    """
    B = x.shape[0]
    tb, grid = _select_tile(B, tb)

    out3 = pl.pallas_call(
        mlp_kernel,
        out_shape=jax.ShapeDtypeStruct((grid, 1, tb), jnp.float32),
        grid_spec=pltpu.PrefetchScalarGridSpec(
            num_scalar_prefetch=0,
            grid=(grid,),
            in_specs=[
                pl.BlockSpec((tb, IN_DIM), lambda i: (i, 0)),        # x tile (f32 stream)
                pl.BlockSpec((IN_DIM, HID_DIM), lambda i: (0, 0)),   # W1^T (resident)
                pl.BlockSpec((1, HID_DIM), lambda i: (0, 0)),        # b1
                pl.BlockSpec((1, HID_DIM), lambda i: (0, 0)),        # w2 row
                pl.BlockSpec(memory_space=pltpu.MemorySpace.SMEM),   # b2 scalar
            ],
            out_specs=pl.BlockSpec((1, 1, tb), lambda i: (i, 0, 0)),  # lane-dense row
        ),
        compiler_params=pltpu.CompilerParams(
            dimension_semantics=("parallel",),
            vmem_limit_bytes=_VMEM_LIMIT),
    )(x, w1_t, b1, w2_row, b2)

    # (grid, 1, tb) is row-major batch order; grid*tb >= B, tail rows (from the
    # ragged last block) are undefined and sliced off here.
    return out3.reshape(grid * tb, OUT_DIM)[:B]


def init_params(key):
    """nn.Linear-shaped params: W (out, in), b (out,); pre-arranged for the kernel."""
    k1, k2, k3, k4 = jax.random.split(key, 4)
    w1 = jax.random.uniform(k1, (HID_DIM, IN_DIM), jnp.float32, -0.1, 0.1)
    b1 = jax.random.uniform(k2, (HID_DIM,), jnp.float32, -0.1, 0.1)
    w2 = jax.random.uniform(k3, (OUT_DIM, HID_DIM), jnp.float32, -0.1, 0.1)
    b2 = jax.random.uniform(k4, (OUT_DIM,), jnp.float32, -0.1, 0.1)
    return (jnp.transpose(w1),             # (128, 64)  = W1^T
            b1.reshape(1, HID_DIM),        # (1, 64)
            w2,                            # (1, 64)    = fc2 weight row as-is
            b2.reshape(1, OUT_DIM))        # (1, 1)


def reference_forward(x, w1_t, b1, w2_row, b2):
    """Pure-JAX f32 reference (matches the f32 PyTorch module)."""
    h = jnp.maximum(jnp.dot(x, w1_t, preferred_element_type=jnp.float32) + b1, 0.0)
    return jnp.dot(h, w2_row.T, preferred_element_type=jnp.float32) + b2


if __name__ == "__main__":
    key = jax.random.PRNGKey(0)
    kx, kp = jax.random.split(key)

    B = 40  # small batch of "transactions", each a 128-dim feature vector
    x = jax.random.normal(kx, (B, IN_DIM), jnp.float32)
    w1_t, b1, w2_row, b2 = init_params(kp)

    # TODO(synk): extract_features / RandomForestClassifier (sklearn) have no
    # tensor semantics; features are supplied directly as the (B, 128) input.

    ref = reference_forward(x, w1_t, b1, w2_row, b2)

    # Small tb exercises the multi-step grid + ragged (un-padded) last block.
    out_small = ai_transaction_validator_forward(x, w1_t, b1, w2_row, b2, tb=16)
    out_small = jax.block_until_ready(out_small)

    # Default tb exercises the single-block / per-core-split path.
    out_big = ai_transaction_validator_forward(x, w1_t, b1, w2_row, b2)
    out_big = jax.block_until_ready(out_big)

    assert out_small.shape == (B, OUT_DIM)
    assert out_big.shape == (B, OUT_DIM)
    # Tolerance covers MXU f32 pass-decomposition differences vs the XLA dot.
    assert jnp.allclose(out_small, ref, atol=5e-3, rtol=5e-3), "mismatch (tiled)"
    assert jnp.allclose(out_big, ref, atol=5e-3, rtol=5e-3), "mismatch (default)"

    print("KERNEL_OK")
</pallas_src>

<mosaic_0001>
module attributes {stable_mosaic.version = 11 : i64} {
  func.func @mlp_kernel(%arg0: i32, %arg1: memref<16x128xf32, #tpu.memory_space<vmem>>, %arg2: memref<128x64xf32, #tpu.memory_space<vmem>>, %arg3: memref<1x64xf32, #tpu.memory_space<vmem>>, %arg4: memref<1x64xf32, #tpu.memory_space<vmem>>, %arg5: memref<1x1xf32, #tpu.memory_space<smem>>, %arg6: memref<1x1x16xf32, #tpu.memory_space<vmem>>) attributes {dimension_semantics = [#tpu.dimension_semantics<parallel>], iteration_bounds = array<i64: 3>, scalar_prefetch = 0 : i64, scratch_operands = 0 : i64, tpu.core_type = #tpu.core_type<tc>, window_params = [{transform_indices = @transform_0, window_bounds = array<i64: 16, 128>}, {pipeline_mode = #tpu.pipeline_mode<synchronous>, transform_indices = @transform_1, window_bounds = array<i64: 128, 64>}, {pipeline_mode = #tpu.pipeline_mode<synchronous>, transform_indices = @transform_2, window_bounds = array<i64: 1, 64>}, {pipeline_mode = #tpu.pipeline_mode<synchronous>, transform_indices = @transform_3, window_bounds = array<i64: 1, 64>}, {transform_indices = @transform_4, window_bounds = array<i64: 1, 1>}, {transform_indices = @transform_5, window_bounds = array<i64: 1, 1, 16>}]} {
    %c0 = arith.constant 0 : index
    %c0_0 = arith.constant 0 : index
    %0 = vector.load %arg1[%c0, %c0_0] : memref<16x128xf32, #tpu.memory_space<vmem>>, vector<16x128xf32>
    %c0_1 = arith.constant 0 : index
    %c0_2 = arith.constant 0 : index
    %1 = vector.load %arg2[%c0_1, %c0_2] : memref<128x64xf32, #tpu.memory_space<vmem>>, vector<128x64xf32>
    %cst = arith.constant dense<0.000000e+00> : vector<16x64xf32>
    %2 = tpu.matmul %0, %1, %cst {dimension_numbers = #tpu.dot_dimension_numbers<[1], [0], [0], [1], [0, 0, 1, 1], [], []>} : vector<16x128xf32>, vector<128x64xf32>, vector<16x64xf32> -> vector<16x64xf32>
    %c0_3 = arith.constant 0 : index
    %c0_4 = arith.constant 0 : index
    %3 = vector.load %arg3[%c0_3, %c0_4] : memref<1x64xf32, #tpu.memory_space<vmem>>, vector<1x64xf32>
    %4 = vector.broadcast %3 : vector<1x64xf32> to vector<16x64xf32>
    %5 = arith.addf %2, %4 : vector<16x64xf32>
    %cst_5 = arith.constant 0.000000e+00 : f32
    %6 = vector.broadcast %cst_5 : f32 to vector<16x64xf32>
    %7 = arith.maximumf %5, %6 : vector<16x64xf32>
    %c0_6 = arith.constant 0 : index
    %c0_7 = arith.constant 0 : index
    %8 = vector.load %arg4[%c0_6, %c0_7] : memref<1x64xf32, #tpu.memory_space<vmem>>, vector<1x64xf32>
    %cst_8 = arith.constant dense<0.000000e+00> : vector<1x16xf32>
    %9 = tpu.matmul %8, %7, %cst_8 {dimension_numbers = #tpu.dot_dimension_numbers<[1], [1], [0], [0], [0, 0, 1, 0], [], []>} : vector<1x64xf32>, vector<16x64xf32>, vector<1x16xf32> -> vector<1x16xf32>
    %c0_9 = arith.constant 0 : index
    %c0_10 = arith.constant 0 : index
    %10 = memref.load %arg5[%c0_9, %c0_10] : memref<1x1xf32, #tpu.memory_space<smem>>
    %11 = vector.broadcast %10 : f32 to vector<1x16xf32>
    %12 = arith.addf %9, %11 : vector<1x16xf32>
    %c0_11 = arith.constant 0 : index
    %c0_12 = arith.constant 0 : index
    %c0_13 = arith.constant 0 : index
    %13 = vector.load %arg6[%c0_11, %c0_12, %c0_13] : memref<1x1x16xf32, #tpu.memory_space<vmem>>, vector<1x1x16xf32>
    %14 = vector.shape_cast %13 : vector<1x1x16xf32> to vector<1x16xf32>
    %15 = vector.shape_cast %12 : vector<1x16xf32> to vector<1x1x16xf32>
    tpu.vector_store %arg6[%c0_11, %c0_12, %c0_13], %15 {strides = array<i32>} : memref<1x1x16xf32, #tpu.memory_space<vmem>>, vector<1x1x16xf32>,
    return
  }
  func.func @transform_0(%arg0: i32) -> (i32, i32) {
    %c0_i32 = arith.constant 0 : i32
    %c0_i32_0 = arith.constant 0 : i32
    return %arg0, %c0_i32 : i32, i32
  }
  func.func @transform_1(%arg0: i32) -> (i32, i32) {
    %c0_i32 = arith.constant 0 : i32
    %c0_i32_0 = arith.constant 0 : i32
    %c0_i32_1 = arith.constant 0 : i32
    return %c0_i32, %c0_i32_0 : i32, i32
  }
  func.func @transform_2(%arg0: i32) -> (i32, i32) {
    %c0_i32 = arith.constant 0 : i32
    %c0_i32_0 = arith.constant 0 : i32
    %c0_i32_1 = arith.constant 0 : i32
    return %c0_i32, %c0_i32_0 : i32, i32
  }
  func.func @transform_3(%arg0: i32) -> (i32, i32) {
    %c0_i32 = arith.constant 0 : i32
    %c0_i32_0 = arith.constant 0 : i32
    %c0_i32_1 = arith.constant 0 : i32
    return %c0_i32, %c0_i32_0 : i32, i32
  }
  func.func @transform_4(%arg0: i32) -> (i32, i32) {
    %c0_i32 = arith.constant 0 : i32
    %c0_i32_0 = arith.constant 0 : i32
    %c0_i32_1 = arith.constant 0 : i32
    return %c0_i32, %c0_i32_0 : i32, i32
  }
  func.func @transform_5(%arg0: i32) -> (i32, i32, i32) {
    %c0_i32 = arith.constant 0 : i32
    %c0_i32_0 = arith.constant 0 : i32
    %c0_i32_1 = arith.constant 0 : i32
    return %arg0, %c0_i32, %c0_i32_0 : i32, i32, i32
  }
}

</mosaic_0001>

<llo_original>
// kernel: tpu_custom_call.1
$region0: #{tpu_custom_call.1}
  #allocation0 [shape = 'u32[]', space=smem, size = 0x4, offset = 0x4, fixed_abs, tag = 'smem constant byte address 0x4 - core index']
  #allocation1 [shape = 'u32[144,128]{1,0:T(1,128)}', space=vmem, size = 0x12000, scoped, tag = 'internal scratch']
  #allocation2 [shape = 'f32[1,1]{1,0:T(1,128)S(6)}', space=smem, size = 0x200, scoped, tag = 'scoped memory for tpu_custom_call.1']
  %s0 = inlined_call_operand.vmem [shape: f32[40,128], index: 0, kind: input, shape index: {}]
  %s1 = inlined_call_operand.vmem [shape: f32[128,64], index: 1, kind: input, shape index: {}]
  %s2 = inlined_call_operand.vmem [shape: f32[1,64], index: 2, kind: input, shape index: {}]
  %s3 = inlined_call_operand.vmem [shape: f32[1,64], index: 3, kind: input, shape index: {}]
  %s4 = inlined_call_operand.<no memory space> [shape: f32[1,1], index: 4, kind: input, shape index: {}]
  %s5 = inlined_call_operand.hbm [shape: f32[3,1,16], index: 5, kind: output, shape index: {}]
  %s6 = sld [smem:[#allocation0]]
  $region53: #{tpu_custom_call.1} parent=0
    _
  %s8 = ssub.s32 1, %s6
  %s9 = scalar_select 0, %s8, %s6
  %10 = sst [smem:[#allocation2]] %s4
  $region1: #{tpu_custom_call.1} parent=0
    #allocation3 [shape = 'u8[1024]{0}', space=vmem, size = 0x400, scoped, tag = 'output window, operand 0']
    #allocation4 [shape = 's32[2]{0}', space=sflag, size = 0x8, scoped, tag = 'scoped memory for tpu_custom_call.1']
    %11 = vsyncpa [#allocation4], 0
    %s12 = scalar_lea.sflag [#allocation4], 1
    %13 = vsyncpa %s12, 0
    loop: start=0, step=1, limit=5
    $region2: #{tpu_custom_call.1} parent=1 // loop_pre_header
      _
    $region3: #{tpu_custom_call.1} parent=1 // loop_header
      %s15 = sphi 0, %s19
      %p16 = scmp.ge.s32.totalorder %s15, 5
      %s25 = sphi 0, %s27
      %s28 = sphi 0, %s25
      %s29 = sphi 0, %s28
      %s45 = sphi 0, %s29
      %s49 = sphi 0, %s49
      %s51 = sphi 0, %s49
      %s52 = sphi 0, %s51
      %s66 = sphi 0, %s52
      %s70 = sphi 0, %s70
      %s72 = sphi 0, %s70
      %s73 = sphi 0, %s72
      %s87 = sphi 0, %s73
      %s91 = sphi 0, %s91
      %s93 = sphi 0, %s91
      %s94 = sphi 0, %s93
      %s108 = sphi 0, %s94
      %s112 = sphi 0, %s112
      %s114 = sphi 0, %s112
      %s115 = sphi 0, %s114
      %s129 = sphi 0, %s115
      %s135 = sphi 0, %s137
      %s138 = sphi 0, %s135
      %s139 = sphi 0, %s138
      %s155 = sphi 0, %s139
    $region4: #{tpu_custom_call.1} parent=1 // loop_header_branch
      %18 = sbr.rel (%p16) target = $region8
    $region5: #{tpu_custom_call.1} parent=1 // loop_body
      %s20 = ssub.s32 %s15, 1
      %s21 = ssub.s32 %s15, 2
      %s22 = sadd.s32 %s15, 1
      %s23 = ssub.s32 %s15, %s22
      %p24 = scmp.eq.s32.totalorder %s23, 0
      %s26 = sadd.s32 %s25, 1
      %s27 = scalar_select %p24, %s25, %s26
      %p30 = pneg %p24
      %p31 = scmp.eq.s32.totalorder %s15, 2
      %p32 = por %p30, %p31
      %p33 = scmp.ne.s32.totalorder %s25, %s28
      %p34 = scmp.eq.s32.totalorder %s15, 0
      %p35 = por %p33, %p34
      %p36 = scmp.ne.s32.totalorder %s25, %s28
      %p37 = scmp.eq.s32.totalorder %s20, 2
      %p38 = por %p36, %p37
      %p39 = scmp.ne.s32.totalorder %s28, %s29
      %p40 = scmp.eq.s32.totalorder %s20, 0
      %p41 = por %p39, %p40
      %p42 = scmp.ne.s32.totalorder %s28, %s29
      %p43 = scmp.eq.s32.totalorder %s21, 2
      %p44 = por %p42, %p43
      %p46 = scmp.ne.s32.totalorder %s29, %s45
      %p47 = scmp.eq.s32.totalorder %s21, 0
      %p48 = por %p46, %p47
      %s50 = sadd.s32 %s49, 1
      %p53 = scmp.eq.s32.totalorder %s15, 2
      %p54 = scmp.ne.s32.totalorder %s49, %s51
      %p55 = scmp.eq.s32.totalorder %s15, 0
      %p56 = por %p54, %p55
      %p57 = scmp.ne.s32.totalorder %s49, %s51
      %p58 = scmp.eq.s32.totalorder %s20, 2
      %p59 = por %p57, %p58
      %p60 = scmp.ne.s32.totalorder %s51, %s52
      %p61 = scmp.eq.s32.totalorder %s20, 0
      %p62 = por %p60, %p61
      %p63 = scmp.ne.s32.totalorder %s51, %s52
      %p64 = scmp.eq.s32.totalorder %s21, 2
      %p65 = por %p63, %p64
      %p67 = scmp.ne.s32.totalorder %s52, %s66
      %p68 = scmp.eq.s32.totalorder %s21, 0
      %p69 = por %p67, %p68
      %s71 = sadd.s32 %s70, 1
      %p74 = scmp.eq.s32.totalorder %s15, 2
      %p75 = scmp.ne.s32.totalorder %s70, %s72
      %p76 = scmp.eq.s32.totalorder %s15, 0
      %p77 = por %p75, %p76
      %p78 = scmp.ne.s32.totalorder %s70, %s72
      %p79 = scmp.eq.s32.totalorder %s20, 2
      %p80 = por %p78, %p79
      %p81 = scmp.ne.s32.totalorder %s72, %s73
      %p82 = scmp.eq.s32.totalorder %s20, 0
      %p83 = por %p81, %p82
      %p84 = scmp.ne.s32.totalorder %s72, %s73
      %p85 = scmp.eq.s32.totalorder %s21, 2
      %p86 = por %p84, %p85
      %p88 = scmp.ne.s32.totalorder %s73, %s87
      %p89 = scmp.eq.s32.totalorder %s21, 0
      %p90 = por %p88, %p89
      %s92 = sadd.s32 %s91, 1
      %p95 = scmp.eq.s32.totalorder %s15, 2
      %p96 = scmp.ne.s32.totalorder %s91, %s93
      %p97 = scmp.eq.s32.totalorder %s15, 0
      %p98 = por %p96, %p97
      %p99 = scmp.ne.s32.totalorder %s91, %s93
      %p100 = scmp.eq.s32.totalorder %s20, 2
      %p101 = por %p99, %p100
      %p102 = scmp.ne.s32.totalorder %s93, %s94
      %p103 = scmp.eq.s32.totalorder %s20, 0
      %p104 = por %p102, %p103
      %p105 = scmp.ne.s32.totalorder %s93, %s94
      %p106 = scmp.eq.s32.totalorder %s21, 2
      %p107 = por %p105, %p106
      %p109 = scmp.ne.s32.totalorder %s94, %s108
      %p110 = scmp.eq.s32.totalorder %s21, 0
      %p111 = por %p109, %p110
      %s113 = sadd.s32 %s112, 1
      %p116 = scmp.eq.s32.totalorder %s15, 2
      %p117 = scmp.ne.s32.totalorder %s112, %s114
      %p118 = scmp.eq.s32.totalorder %s15, 0
      %p119 = por %p117, %p118
      %p120 = scmp.ne.s32.totalorder %s112, %s114
      %p121 = scmp.eq.s32.totalorder %s20, 2
      %p122 = por %p120, %p121
      %p123 = scmp.ne.s32.totalorder %s114, %s115
      %p124 = scmp.eq.s32.totalorder %s20, 0
      %p125 = por %p123, %p124
      %p126 = scmp.ne.s32.totalorder %s114, %s115
      %p127 = scmp.eq.s32.totalorder %s21, 2
      %p128 = por %p126, %p127
      %p130 = scmp.ne.s32.totalorder %s115, %s129
      %p131 = scmp.eq.s32.totalorder %s21, 0
      %p132 = por %p130, %p131
      %s133 = ssub.s32 %s15, %s22
      %p134 = scmp.eq.s32.totalorder %s133, 0
      %s136 = sadd.s32 %s135, 1
      %s137 = scalar_select %p134, %s135, %s136
      %p140 = pneg %p134
      %p141 = scmp.eq.s32.totalorder %s15, 2
      %p142 = por %p140, %p141
      %p143 = scmp.ne.s32.totalorder %s135, %s138
      %p144 = scmp.eq.s32.totalorder %s15, 0
      %p145 = por %p143, %p144
      %p146 = scmp.ne.s32.totalorder %s135, %s138
      %p147 = scmp.eq.s32.totalorder %s20, 2
      %p148 = por %p146, %p147
      %p149 = scmp.ne.s32.totalorder %s138, %s139
      %p150 = scmp.eq.s32.totalorder %s20, 0
      %p151 = por %p149, %p150
      %p152 = scmp.ne.s32.totalorder %s138, %s139
      %p153 = scmp.eq.s32.totalorder %s21, 2
      %p154 = por %p152, %p153
      %p156 = scmp.ne.s32.totalorder %s139, %s155
      %p157 = scmp.eq.s32.totalorder %s21, 0
      %p158 = por %p156, %p157
      %p159 = scmp.le.s32.totalorder 1, %s15
      %p160 = scmp.lt.s32.totalorder %s15, 4
      %p161 = pnand %p159, %p160
      %p162 = pneg %p161
      // Predicated region
      $region9: #{tpu_custom_call.1} parent=5 // pred_check
        _
      $region10: #{tpu_custom_call.1} parent=5 // pred_check_branch
        %164 = sbr.rel (%p161) target = $region12
      $region11: #{tpu_custom_call.1} parent=5 // pred_region
        %s165 = ssub.s32 %s15, 1
        // Predicated region
        $region13: #{tpu_custom_call.1} parent=11 // pred_check
          %p166 = pneg %p62
        $region14: #{tpu_custom_call.1} parent=11 // pred_check_branch
          %168 = sbr.rel (%p166) target = $region16
        $region15: #{tpu_custom_call.1} parent=11 // pred_region
          _
        $region16: #{tpu_custom_call.1} parent=11 // pred_fallthru
          _
        // Predicated region
        $region17: #{tpu_custom_call.1} parent=11 // pred_check
          %p169 = pneg %p83
        $region18: #{tpu_custom_call.1} parent=11 // pred_check_branch
          %171 = sbr.rel (%p169) target = $region20
        $region19: #{tpu_custom_call.1} parent=11 // pred_region
          _
        $region20: #{tpu_custom_call.1} parent=11 // pred_fallthru
          _
        // Predicated region
        $region21: #{tpu_custom_call.1} parent=11 // pred_check
          %p172 = pneg %p104
        $region22: #{tpu_custom_call.1} parent=11 // pred_check_branch
          %174 = sbr.rel (%p172) target = $region24
        $region23: #{tpu_custom_call.1} parent=11 // pred_region
          _
        $region24: #{tpu_custom_call.1} parent=11 // pred_fallthru
          _
        // Predicated region
        $region25: #{tpu_custom_call.1} parent=11 // pred_check
          %p175 = pneg %p125
        $region26: #{tpu_custom_call.1} parent=11 // pred_check_branch
          %177 = sbr.rel (%p175) target = $region28
        $region27: #{tpu_custom_call.1} parent=11 // pred_region
          _
        $region28: #{tpu_custom_call.1} parent=11 // pred_fallthru
          _
      $region12: #{tpu_custom_call.1} parent=5 // pred_fallthru
        _
      %p178 = scmp.lt.s32.totalorder %s15, 3
      // Predicated region
      $region29: #{tpu_custom_call.1} parent=5 // pred_check
        %p179 = pneg %p178
      $region30: #{tpu_custom_call.1} parent=5 // pred_check_branch
        %181 = sbr.rel (%p179) target = $region32
      $region31: #{tpu_custom_call.1} parent=5 // pred_region
        // Predicated region
        $region33: #{tpu_custom_call.1} parent=31 // pred_check
          %p182 = pneg %p35
        $region34: #{tpu_custom_call.1} parent=31 // pred_check_branch
          %184 = sbr.rel (%p182) target = $region36
        $region35: #{tpu_custom_call.1} parent=31 // pred_region
          %s185 = smul.u32 2, %s15
          %s186 = ssub.s32 5, %s185
          %p187 = scmp.lt.s32.totalorder %s186, 2
          %s188 = scalar_select %p187, %s186, 2
          %s189 = smul.u32 128, %s188
          %p190 = scmp.lt.s32.totalorder %s185, 4
          %s191 = scalar_select %p190, %s185, 4
          %s192 = smul.addr %s191, 8
          %s193 = scalar_lea.vmem %s0, %s192
          %s194 = smul.u32 2, %s15
          %s195 = ssub.s32 5, %s194
          %p196 = scmp.lt.s32.totalorder %s195, 2
          %s197 = scalar_select %p196, %s195, 2
          %s198 = smul.u32 128, %s197
        $region36: #{tpu_custom_call.1} parent=31 // pred_fallthru
          _
      $region32: #{tpu_custom_call.1} parent=5 // pred_fallthru
        _
      %p199 = scmp.le.s32.totalorder 1, %s15
      %p200 = scmp.lt.s32.totalorder %s15, 4
      %p201 = pnand %p199, %p200
      %p202 = pneg %p201
      // Predicated region
      $region37: #{tpu_custom_call.1} parent=5 // pred_check
        _
      $region38: #{tpu_custom_call.1} parent=5 // pred_check_branch
        %204 = sbr.rel (%p201) target = $region40
      $region39: #{tpu_custom_call.1} parent=5 // pred_region
        %s205 = ssub.s32 %s15, 1
        %s206 = smul.u32 2, %s20
        %s207 = ssub.s32 5, %s206
        %p208 = scmp.lt.s32.totalorder %s207, 2
        %s209 = scalar_select %p208, %s207, 2
        %s210 = smul.u32 128, %s209
        %p211 = scmp.lt.s32.totalorder %s206, 4
        %s212 = scalar_select %p211, %s206, 4
        %s213 = smul.addr %s212, 8
        %s214 = scalar_lea.vmem %s0, %s213
        %p215 = pneg %p41
        %p216 = pneg %p38
        %p217 = pneg %p62
        %p218 = pneg %p59
        %p219 = pneg %p83
        %p220 = pneg %p80
        %p221 = pneg %p104
        %p222 = pneg %p101
        %p223 = pneg %p125
        %p224 = pneg %p122
        %p225 = pneg %p151
        %p226 = pneg %p148
        %s227 = sand.u32 %s138, 1
        %s228 = scalar_lea.sflag [#allocation4], %s227
        %s229 = sand.u32 %s138, 1
        %s230 = scalar_lea.vmem [#allocation3], %s229
        %s231 = smul.u32 2, %s20
        %s232 = ssub.s32 5, %s231
        %p233 = scmp.lt.s32.totalorder %s232, 2
        %s234 = scalar_select %p233, %s232, 2
        %s235 = smul.u32 128, %s234
        %p236 = scmp.lt.s32.totalorder %s231, 4
        %s237 = scalar_select %p236, %s231, 4
        %s238 = smul.addr %s237, 8
        %s239 = scalar_lea.vmem %s0, %s238
        %s240 = smul.u32 2, %s20
        %s241 = ssub.s32 5, %s240
        %p242 = scmp.lt.s32.totalorder %s241, 2
        %s243 = scalar_select %p242, %s241, 2
        %s244 = smul.u32 128, %s243
        %v245 = vld [vmem:[%s239] sm:$0xff]
        %v246 = vld [vmem:[%s239 + $0x8] sm:$0xff]
        %v247 = vld [vmem:[%s1] sm:$0xff]
        %v248 = vld [vmem:[%s1 + $0x8] sm:$0xff]
        %v249 = vld [vmem:[%s1 + $0x10] sm:$0xff]
        %v250 = vld [vmem:[%s1 + $0x18] sm:$0xff]
        %v251 = vld [vmem:[%s1 + $0x20] sm:$0xff]
        %v252 = vld [vmem:[%s1 + $0x28] sm:$0xff]
        %v253 = vld [vmem:[%s1 + $0x30] sm:$0xff]
        %v254 = vld [vmem:[%s1 + $0x38] sm:$0xff]
        %v255 = vld [vmem:[%s1 + $0x40] sm:$0xff]
        %v256 = vld [vmem:[%s1 + $0x48] sm:$0xff]
        %v257 = vld [vmem:[%s1 + $0x50] sm:$0xff]
        %v258 = vld [vmem:[%s1 + $0x58] sm:$0xff]
        %v259 = vld [vmem:[%s1 + $0x60] sm:$0xff]
        %v260 = vld [vmem:[%s1 + $0x68] sm:$0xff]
        %v261 = vld [vmem:[%s1 + $0x70] sm:$0xff]
        %v262 = vld [vmem:[%s1 + $0x78] sm:$0xff]
        %v263 = vld [vmem:[%s2] sm:$0x1]
        %v265 = vlaneseq
        %v266 = vshrl.u32 %v265, 7
        %v267 = vsub.s32 0, %v266
        %v268 = vrot.slane %v263, %v267
        %270 = vmatprep.subr.mxu0 0.0
        %271 = vmatpush1.msra.mxu0 %v247
        %272 = vmatprep.subr.mxu0 0.0
        %273 = vmatpush1.msra.mxu0 %v248
        %274 = vmatprep.subr.mxu0 0.0
        %275 = vmatpush1.msra.mxu0 %v249
        %276 = vmatprep.subr.mxu0 0.0
        %277 = vmatpush1.msra.mxu0 %v250
        %278 = vmatprep.subr.mxu0 0.0
        %279 = vmatpush1.msra.mxu0 %v251
        %280 = vmatprep.subr.mxu0 0.0
        %281 = vmatpush1.msra.mxu0 %v252
        %282 = vmatprep.subr.mxu0 0.0
        %283 = vmatpush1.msra.mxu0 %v253
        %284 = vmatprep.subr.mxu0 0.0
        %285 = vmatpush1.msra.mxu0 %v254
        %286 = vmatprep.subr.mxu0 0.0
        %287 = vmatpush1.msra.mxu0 %v255
        %288 = vmatprep.subr.mxu0 0.0
        %289 = vmatpush1.msra.mxu0 %v256
        %290 = vmatprep.subr.mxu0 0.0
        %291 = vmatpush1.msra.mxu0 %v257
        %292 = vmatprep.subr.mxu0 0.0
        %293 = vmatpush1.msra.mxu0 %v258
        %294 = vmatprep.subr.mxu0 0.0
        %295 = vmatpush1.msra.mxu0 %v259
        %296 = vmatprep.subr.mxu0 0.0
        %297 = vmatpush1.msra.mxu0 %v260
        %298 = vmatprep.subr.mxu0 0.0
        %299 = vmatpush1.msra.mxu0 %v261
        %300 = vmatprep.subr.mxu0 0.0
        %301 = vmatpush1.msra.mxu0 %v262
        %302 = vmatprep.subr.mxu0 0.0
        %303 = vmatpush1.msra.mxu0 0.0
        %304 = vmatprep.subr.mxu0 0.0
        %305 = vmatpush1.msra.mxu0 0.0
        %306 = vmatprep.subr.mxu0 0.0
        %307 = vmatpush1.msra.mxu0 0.0
        %308 = vmatprep.subr.mxu0 0.0
        %309 = vmatpush1.msra.mxu0 0.0
        %310 = vmatprep.subr.mxu0 0.0
        %311 = vmatpush1.msra.mxu0 0.0
        %312 = vmatprep.subr.mxu0 0.0
        %313 = vmatpush1.msra.mxu0 0.0
        %314 = vmatprep.subr.mxu0 0.0
        %315 = vmatpush1.msra.mxu0 0.0
        %316 = vmatprep.subr.mxu0 0.0
        %317 = vmatpush1.msra.mxu0 0.0
        %318 = vmatprep.subr.mxu0 0.0
        %319 = vmatpush1.msra.mxu0 0.0
        %320 = vmatprep.subr.mxu0 0.0
        %321 = vmatpush1.msra.mxu0 0.0
        %322 = vmatprep.subr.mxu0 0.0
        %323 = vmatpush1.msra.mxu0 0.0
        %324 = vmatprep.subr.mxu0 0.0
        %325 = vmatpush1.msra.mxu0 0.0
        %326 = vmatprep.subr.mxu0 0.0
        %327 = vmatpush1.msra.mxu0 0.0
        %328 = vmatprep.subr.mxu0 0.0
        %329 = vmatpush1.msra.mxu0 0.0
        %330 = vmatprep.subr.mxu0 0.0
        %331 = vmatpush1.msra.mxu0 0.0
        %332 = vmatprep.subr.mxu0 0.0
        %333 = vmatpush1.msra.mxu0 0.0
        %334 = vmatprep.mubr.f32.mxu0 0.0
        %335 = vmatmul.mubr.f32.gmra.mrb[0].mxu0 %v245
        %v336 = vpop.f32.mrb[0].mxu0
        %v337 = vadd.f32 %v268, %v336
        %v338 = vpop.f32.mrb[0].mxu0
        %339 = vmatprep.mubr.f32.mxu0 0.0
        %340 = vmatmul.mubr.f32.gmra.mrb[0].mxu0 %v246
        %v341 = vpop.f32.mrb[0].mxu0
        %v342 = vadd.f32 %v268, %v341
        %v343 = vpop.f32.mrb[0].mxu0
        %344 = vdwg.mxu0
        %v345 = vmax.f32 %v337, 0.0
        %v346 = vmax.f32 %v342, 0.0
        %v347 = vld [vmem:[%s3] sm:$0x1]
        %s348 = sld [smem:[#allocation2]]
        %v349 = vstv %s348
        %vm350 = vcmask 523264
        %v352 = vsel %vm350, %v347, 0
        %v355 = vsel %vm350, %v345, 0
        %v358 = vsel %vm350, %v346, 0
        %360 = vmatprep.subr.mxu0 0.0
        %361 = vmatpush1.xpose.msra.mxu0 %v355
        %362 = vmatprep.subr.mxu0 0.0
        %363 = vmatpush1.xpose.msra.mxu0 %v358
        %364 = vmatprep.subr.mxu0 0.0
        %365 = vmatpush1.xpose.msra.mxu0 0.0
        %366 = vmatprep.subr.mxu0 0.0
        %367 = vmatpush1.xpose.msra.mxu0 0.0
        %368 = vmatprep.subr.mxu0 0.0
        %369 = vmatpush1.xpose.msra.mxu0 0.0
        %370 = vmatprep.subr.mxu0 0.0
        %371 = vmatpush1.xpose.msra.mxu0 0.0
        %372 = vmatprep.subr.mxu0 0.0
        %373 = vmatpush1.xpose.msra.mxu0 0.0
        %374 = vmatprep.subr.mxu0 0.0
        %375 = vmatpush1.xpose.msra.mxu0 0.0
        %376 = vmatprep.subr.mxu0 0.0
        %377 = vmatpush1.xpose.msra.mxu0 0.0
        %378 = vmatprep.subr.mxu0 0.0
        %379 = vmatpush1.xpose.msra.mxu0 0.0
        %380 = vmatprep.subr.mxu0 0.0
        %381 = vmatpush1.xpose.msra.mxu0 0.0
        %382 = vmatprep.subr.mxu0 0.0
        %383 = vmatpush1.xpose.msra.mxu0 0.0
        %384 = vmatprep.subr.mxu0 0.0
        %385 = vmatpush1.xpose.msra.mxu0 0.0
        %386 = vmatprep.subr.mxu0 0.0
        %387 = vmatpush1.xpose.msra.mxu0 0.0
        %388 = vmatprep.subr.mxu0 0.0
        %389 = vmatpush1.xpose.msra.mxu0 0.0
        %390 = vmatprep.subr.mxu0 0.0
        %391 = vmatpush1.xpose.msra.mxu0 0.0
        %392 = vmatprep.subr.mxu0 0.0
        %393 = vmatpush1.xpose.msra.mxu0 0.0
        %394 = vmatprep.subr.mxu0 0.0
        %395 = vmatpush1.xpose.msra.mxu0 0.0
        %396 = vmatprep.subr.mxu0 0.0
        %397 = vmatpush1.xpose.msra.mxu0 0.0
        %398 = vmatprep.subr.mxu0 0.0
        %399 = vmatpush1.xpose.msra.mxu0 0.0
        %400 = vmatprep.subr.mxu0 0.0
        %401 = vmatpush1.xpose.msra.mxu0 0.0
        %402 = vmatprep.subr.mxu0 0.0
        %403 = vmatpush1.xpose.msra.mxu0 0.0
        %404 = vmatprep.subr.mxu0 0.0
        %405 = vmatpush1.xpose.msra.mxu0 0.0
        %406 = vmatprep.subr.mxu0 0.0
        %407 = vmatpush1.xpose.msra.mxu0 0.0
        %408 = vmatprep.subr.mxu0 0.0
        %409 = vmatpush1.xpose.msra.mxu0 0.0
        %410 = vmatprep.subr.mxu0 0.0
        %411 = vmatpush1.xpose.msra.mxu0 0.0
        %412 = vmatprep.subr.mxu0 0.0
        %413 = vmatpush1.xpose.msra.mxu0 0.0
        %414 = vmatprep.subr.mxu0 0.0
        %415 = vmatpush1.xpose.msra.mxu0 0.0
        %416 = vmatprep.subr.mxu0 0.0
        %417 = vmatpush1.xpose.msra.mxu0 0.0
        %418 = vmatprep.subr.mxu0 0.0
        %419 = vmatpush1.xpose.msra.mxu0 0.0
        %420 = vmatprep.subr.mxu0 0.0
        %421 = vmatpush1.xpose.msra.mxu0 0.0
        %422 = vmatprep.subr.mxu0 0.0
        %423 = vmatpush1.xpose.msra.mxu0 0.0
        %424 = vmatprep.mubr.f32.mxu0 0.0
        %425 = vmatmul.mubr.f32.gmra.mrb[0].mxu0 %v352
        %v426 = vpop.f32.mrb[0].mxu0
        %v427 = vadd.f32 %v349, %v426
        %v428 = vpop.f32.mrb[0].mxu0
        %429 = vdwg.mxu0
        %vm430 = vcmask 122880
        %431 = vst.msk [vmem:[%s230] sm:$0x1] %vm430, %v427
        %s432 = sand.u32 %s138, 1
        %s433 = scalar_lea.sflag [#allocation4], %s432
        %s434 = sand.u32 %s138, 1
        %s435 = scalar_lea.vmem [#allocation3], %s434
        // Predicated region
        $region41: #{tpu_custom_call.1} parent=39 // pred_check
          %p436 = pneg %p148
        $region42: #{tpu_custom_call.1} parent=39 // pred_check_branch
          %438 = sbr.rel (%p436) target = $region44
        $region43: #{tpu_custom_call.1} parent=39 // pred_region
          %s440 = ssub.s32 16, 16
          %441 = vsyncadd %s433, %s440
          %s442 = smul.addr %s20, 16
          %s443 = scalar_lea.hbm %s5, %s442
          %s445 = sshll.u32 %s435, 4
          %s446 = int_to_ptr.vmem [resolvable:$true] %s445
          %448 = dma.vmem_to_hbm [thread:$0]  %s446, 16, %s443, %s433
        $region44: #{tpu_custom_call.1} parent=39 // pred_fallthru
          _
      $region40: #{tpu_custom_call.1} parent=5 // pred_fallthru
        _
      %p449 = scmp.le.s32.totalorder 2, %s15
      // Predicated region
      $region45: #{tpu_custom_call.1} parent=5 // pred_check
        %p450 = pneg %p449
      $region46: #{tpu_custom_call.1} parent=5 // pred_check_branch
        %452 = sbr.rel (%p450) target = $region48
      $region47: #{tpu_custom_call.1} parent=5 // pred_region
        %s453 = ssub.s32 %s15, 2
        // Predicated region
        $region49: #{tpu_custom_call.1} parent=47 // pred_check
          %p454 = pneg %p154
        $region50: #{tpu_custom_call.1} parent=47 // pred_check_branch
          %456 = sbr.rel (%p454) target = $region52
        $region51: #{tpu_custom_call.1} parent=47 // pred_region
          %s457 = sand.u32 %s139, 1
          %s458 = scalar_lea.sflag [#allocation4], %s457
          %s459 = sand.u32 %s139, 1
          %s460 = scalar_lea.vmem [#allocation3], %s459
          %461 = dma.done %s458, 16
        $region52: #{tpu_custom_call.1} parent=47 // pred_fallthru
          _
      $region48: #{tpu_custom_call.1} parent=5 // pred_fallthru
        _
    $region6: #{tpu_custom_call.1} parent=1 // loop_footer
      %s19 = sadd.s32 1, %s15
    $region7: #{tpu_custom_call.1} parent=1 // loop_footer_branch
      %14 = sbr.rel target = $region3
    $region8: #{tpu_custom_call.1} parent=1 // loop_exit
      _
    %462 = vsyncpa [#allocation4], 1
    %s463 = scalar_lea.sflag [#allocation4], 1
    %464 = vsyncpa %s463, 1

</llo_original>
